<compile_context>
chip_gen: v7x
topology: tpu7x:2x2x1
jax: 0.10.0
libtpu: 0.0.40
codegen_flags: <defaults>
</compile_context>

<pallas_src>
import jax
import jax.numpy as jnp
from jax.experimental import pallas as pl
from jax.experimental.pallas import tpu as pltpu
import numpy as np


def _channel_attention_kernel(x_ref, w1t_ref, alpha_ref, w2t_ref, o_ref):
    # x_ref: (TN, C, H*W) with the flattened spatial axis lane-dense.
    x = x_ref[...].astype(jnp.float32)

    # AdaptiveAvgPool2d(1): mean over the flattened spatial (lane) axis.
    avg = jnp.mean(x, axis=-1)                                            # (TN, C)

    # fc1 (1x1 conv, no bias) -> per-channel PReLU -> fc2 (1x1 conv, no bias),
    # batched over the tile's TN rows (one MXU push per matmul).
    h = jnp.dot(avg, w1t_ref[...], preferred_element_type=jnp.float32)    # (TN, Cr)
    h = jnp.where(h > 0, h, alpha_ref[...] * h)                           # PReLU
    y = jnp.dot(h, w2t_ref[...], preferred_element_type=jnp.float32)      # (TN, C)

    o_ref[...] = jax.nn.sigmoid(y).astype(o_ref.dtype)                    # lane-dense store


def channel_attention(x, w1, alpha, w2):
    """ChannelAttention forward: sigmoid(fc2(prelu(fc1(avgpool(x))))).

    x:     (N, C, H, W)
    w1:    (Cr, C)   fc1 weight (OIHW squeezed), Cr = C // ratio
    alpha: (Cr,)     per-channel PReLU slopes (nn.PReLU(Cr))
    w2:    (C, Cr)   fc2 weight
    Returns (N, C, 1, 1), matching the PyTorch module.
    """
    N, C, H, W = x.shape
    Cr = w1.shape[0]
    HW = H * W
    elt = x.dtype.itemsize

    # Pick the batch tile: as many rows per step as fit a conservative VMEM
    # budget (input is double-buffered by the pipeline).  8 MiB keeps us well
    # under the smallest scoped-VMEM default (v5e: 16 MiB) with headroom.
    budget = 8 << 20
    tn = max(1, min(N, budget // (3 * C * HW * elt)))
    if tn < N:
        # Multi-step grid: keep the output tile's sublane dim 8-aligned.
        tn = max(8, (tn // 8) * 8)
    steps = pl.cdiv(N, tn)
    n_pad = steps * tn

    x_flat = x.reshape(N, C, HW)                       # lane-dense NC(HW)
    if n_pad != N:
        x_flat = jnp.pad(x_flat, ((0, n_pad - N), (0, 0), (0, 0)))

    w1t = jnp.transpose(w1)                            # (C, Cr)
    w2t = jnp.transpose(w2)                            # (Cr, C)
    alpha_row = jnp.reshape(alpha, (1, Cr))            # broadcast over batch rows

    # Only shard the grid across v7x's two TensorCores when there is enough
    # work per core; a single tiny HBM-bound step is better on one TC.
    semantics = ("parallel",) if steps >= 4 else ("arbitrary",)

    out = pl.pallas_call(
        _channel_attention_kernel,
        out_shape=jax.ShapeDtypeStruct((n_pad, C), x.dtype),
        grid_spec=pltpu.PrefetchScalarGridSpec(
            num_scalar_prefetch=0,
            grid=(steps,),
            in_specs=[
                pl.BlockSpec((tn, C, HW), lambda b: (b, 0, 0)),
                pl.BlockSpec((C, Cr), lambda b: (0, 0)),
                pl.BlockSpec((1, Cr), lambda b: (0, 0)),
                pl.BlockSpec((Cr, C), lambda b: (0, 0)),
            ],
            out_specs=pl.BlockSpec((tn, C), lambda b: (b, 0)),
        ),
        compiler_params=pltpu.CompilerParams(dimension_semantics=semantics),
    )(x_flat, w1t, alpha_row, w2t)

    return out[:N].reshape(N, C, 1, 1)


def reference(x, w1, alpha, w2):
    """Plain-JAX reference matching the PyTorch ChannelAttention module."""
    avg = jnp.mean(x, axis=(2, 3), keepdims=True)        # (N, C, 1, 1)
    h = jnp.einsum('rc,ncij->nrij', w1, avg)             # fc1
    a = alpha.reshape(1, -1, 1, 1)
    h = jnp.where(h > 0, h, a * h)                       # PReLU (per-channel)
    y = jnp.einsum('cr,nrij->ncij', w2, h)               # fc2
    return jax.nn.sigmoid(y)


if __name__ == "__main__":
    N, C, H, W = 2, 32, 16, 16
    ratio = 16
    Cr = C // ratio

    key = jax.random.PRNGKey(0)
    kx, k1, k2 = jax.random.split(key, 3)

    x = jax.random.normal(kx, (N, C, H, W), dtype=jnp.float32)
    w1 = jax.random.normal(k1, (Cr, C), dtype=jnp.float32) * 0.1       # fc1 weight
    w2 = jax.random.normal(k2, (C, Cr), dtype=jnp.float32) * 0.1       # fc2 weight
    alpha = jnp.full((Cr,), 0.25, dtype=jnp.float32)                   # nn.PReLU(Cr) default init

    out = jax.block_until_ready(channel_attention(x, w1, alpha, w2))
    ref = jax.block_until_ready(reference(x, w1, alpha, w2))
    np.testing.assert_allclose(np.asarray(out), np.asarray(ref), rtol=1e-4, atol=1e-4)

    print("KERNEL_OK")
</pallas_src>

<mosaic_0001>
module attributes {stable_mosaic.version = 11 : i64} {
  func.func @_channel_attention_kernel(%arg0: i32, %arg1: memref<2x32x256xf32, #tpu.memory_space<vmem>>, %arg2: memref<32x2xf32, #tpu.memory_space<vmem>>, %arg3: memref<1x2xf32, #tpu.memory_space<vmem>>, %arg4: memref<2x32xf32, #tpu.memory_space<vmem>>, %arg5: memref<2x32xf32, #tpu.memory_space<vmem>>) attributes {dimension_semantics = [#tpu.dimension_semantics<arbitrary>], iteration_bounds = array<i64: 1>, scalar_prefetch = 0 : i64, scratch_operands = 0 : i64, tpu.core_type = #tpu.core_type<tc>, window_params = [{transform_indices = @transform_0, window_bounds = array<i64: 2, 32, 256>}, {pipeline_mode = #tpu.pipeline_mode<synchronous>, transform_indices = @transform_1, window_bounds = array<i64: 32, 2>}, {pipeline_mode = #tpu.pipeline_mode<synchronous>, transform_indices = @transform_2, window_bounds = array<i64: 1, 2>}, {pipeline_mode = #tpu.pipeline_mode<synchronous>, transform_indices = @transform_3, window_bounds = array<i64: 2, 32>}, {transform_indices = @transform_4, window_bounds = array<i64: 2, 32>}]} {
    %c0 = arith.constant 0 : index
    %c0_0 = arith.constant 0 : index
    %c0_1 = arith.constant 0 : index
    %0 = vector.load %arg1[%c0, %c0_0, %c0_1] : memref<2x32x256xf32, #tpu.memory_space<vmem>>, vector<2x32x256xf32>
    %cst = arith.constant dense<0.000000e+00> : vector<2x32xf32>
    %1 = vector.multi_reduction <add>, %0, %cst [2] : vector<2x32x256xf32> to vector<2x32xf32>
    %cst_2 = arith.constant 2.560000e+02 : f32
    %2 = vector.broadcast %cst_2 : f32 to vector<2x32xf32>
    %3 = arith.divf %1, %2 : vector<2x32xf32>
    %c0_3 = arith.constant 0 : index
    %c0_4 = arith.constant 0 : index
    %4 = vector.load %arg2[%c0_3, %c0_4] : memref<32x2xf32, #tpu.memory_space<vmem>>, vector<32x2xf32>
    %cst_5 = arith.constant dense<0.000000e+00> : vector<2x2xf32>
    %5 = tpu.matmul %3, %4, %cst_5 {dimension_numbers = #tpu.dot_dimension_numbers<[1], [0], [0], [1], [0, 0, 1, 1], [], []>} : vector<2x32xf32>, vector<32x2xf32>, vector<2x2xf32> -> vector<2x2xf32>
    %cst_6 = arith.constant 0.000000e+00 : f32
    %6 = vector.broadcast %cst_6 : f32 to vector<2x2xf32>
    %7 = arith.cmpf ogt, %5, %6 : vector<2x2xf32>
    %c0_7 = arith.constant 0 : index
    %c0_8 = arith.constant 0 : index
    %8 = vector.load %arg3[%c0_7, %c0_8] : memref<1x2xf32, #tpu.memory_space<vmem>>, vector<1x2xf32>
    %9 = vector.broadcast %8 : vector<1x2xf32> to vector<2x2xf32>
    %10 = arith.mulf %9, %5 : vector<2x2xf32>
    %11 = arith.select %7, %5, %10 : vector<2x2xi1>, vector<2x2xf32>
    %c0_9 = arith.constant 0 : index
    %c0_10 = arith.constant 0 : index
    %12 = vector.load %arg4[%c0_9, %c0_10] : memref<2x32xf32, #tpu.memory_space<vmem>>, vector<2x32xf32>
    %cst_11 = arith.constant dense<0.000000e+00> : vector<2x32xf32>
    %13 = tpu.matmul %11, %12, %cst_11 {dimension_numbers = #tpu.dot_dimension_numbers<[1], [0], [0], [1], [0, 0, 1, 1], [], []>} : vector<2x2xf32>, vector<2x32xf32>, vector<2x32xf32> -> vector<2x32xf32>
    %14 = arith.negf %13 : vector<2x32xf32>
    %15 = math.exp %14 : vector<2x32xf32>
    %cst_12 = arith.constant 1.000000e+00 : f32
    %16 = vector.broadcast %cst_12 : f32 to vector<2x32xf32>
    %17 = arith.addf %16, %15 : vector<2x32xf32>
    %18 = arith.divf %16, %17 : vector<2x32xf32>
    %c0_13 = arith.constant 0 : index
    %c0_14 = arith.constant 0 : index
    %19 = vector.load %arg5[%c0_13, %c0_14] : memref<2x32xf32, #tpu.memory_space<vmem>>, vector<2x32xf32>
    tpu.vector_store %arg5[%c0_13, %c0_14], %18 {strides = array<i32>} : memref<2x32xf32, #tpu.memory_space<vmem>>, vector<2x32xf32>,
    return
  }
  func.func @transform_0(%arg0: i32) -> (i32, i32, i32) {
    %c0_i32 = arith.constant 0 : i32
    %c0_i32_0 = arith.constant 0 : i32
    %c0_i32_1 = arith.constant 0 : i32
    return %arg0, %c0_i32, %c0_i32_0 : i32, i32, i32
  }
  func.func @transform_1(%arg0: i32) -> (i32, i32) {
    %c0_i32 = arith.constant 0 : i32
    %c0_i32_0 = arith.constant 0 : i32
    %c0_i32_1 = arith.constant 0 : i32
    return %c0_i32, %c0_i32_0 : i32, i32
  }
  func.func @transform_2(%arg0: i32) -> (i32, i32) {
    %c0_i32 = arith.constant 0 : i32
    %c0_i32_0 = arith.constant 0 : i32
    %c0_i32_1 = arith.constant 0 : i32
    return %c0_i32, %c0_i32_0 : i32, i32
  }
  func.func @transform_3(%arg0: i32) -> (i32, i32) {
    %c0_i32 = arith.constant 0 : i32
    %c0_i32_0 = arith.constant 0 : i32
    %c0_i32_1 = arith.constant 0 : i32
    return %c0_i32, %c0_i32_0 : i32, i32
  }
  func.func @transform_4(%arg0: i32) -> (i32, i32) {
    %c0_i32 = arith.constant 0 : i32
    %c0_i32_0 = arith.constant 0 : i32
    return %arg0, %c0_i32 : i32, i32
  }
}

</mosaic_0001>

<llo_original>
// kernel: tpu_custom_call.1
$region0: #{tpu_custom_call.1}
  #allocation0 [shape = 'u32[]', space=smem, size = 0x4, offset = 0x4, fixed_abs, tag = 'smem constant byte address 0x4 - core index']
  #allocation1 [shape = 'u32[144,128]{1,0:T(1,128)}', space=vmem, size = 0x12000, scoped, tag = 'internal scratch']
  %s0 = inlined_call_operand.hbm [shape: f32[2,32,256], index: 0, kind: input, shape index: {}]
  %s1 = inlined_call_operand.vmem [shape: f32[32,2], index: 1, kind: input, shape index: {}]
  %s2 = inlined_call_operand.vmem [shape: f32[1,2], index: 2, kind: input, shape index: {}]
  %s3 = inlined_call_operand.vmem [shape: f32[2,32], index: 3, kind: input, shape index: {}]
  %s4 = inlined_call_operand.hbm [shape: f32[2,32], index: 4, kind: output, shape index: {}]
  %s5 = sld [smem:[#allocation0]]
  $region30: #{tpu_custom_call.1} parent=0
    _
  %s7 = ssub.s32 1, %s5
  %s8 = scalar_select 0, %s7, %s5
  $region1: #{tpu_custom_call.1} parent=0
    #allocation2 [shape = 'u8[65536]{0}', space=vmem, size = 0x10000, scoped, tag = 'input window, operand 0, single buffered']
    #allocation3 [shape = 's32[1]{0}', space=sflag, size = 0x4, scoped, tag = 'scoped memory for tpu_custom_call.1']
    #allocation4 [shape = 's32[1]{0}', space=sflag, size = 0x4, scoped, tag = 'scoped memory for tpu_custom_call.1']
    #allocation5 [shape = 'u8[1024]{0}', space=vmem, size = 0x400, scoped, tag = 'output window, operand 0, single buffered']
    %9 = vsyncpa [#allocation3], 0
    %10 = vsyncpa [#allocation4], 0
    // Predicated region
    $region2: #{tpu_custom_call.1} parent=1 // pred_check
      _
    $region3: #{tpu_custom_call.1} parent=1 // pred_check_branch
      %12 = sbr.rel (0) target = $region5
    $region4: #{tpu_custom_call.1} parent=1 // pred_region
      %s14 = ssub.s32 2048, 2048
      %15 = vsyncadd [#allocation3], %s14
      %s16 = sshll.u32 [#allocation2], 4
      %s17 = int_to_ptr.vmem [resolvable:$true] %s16
      %22 = dma.hbm_to_vmem [thread:$0]  %s0, 2048, %s17, [#allocation3], 256, 256, 16
    $region5: #{tpu_custom_call.1} parent=1 // pred_fallthru
      _
    // Predicated region
    $region6: #{tpu_custom_call.1} parent=1 // pred_check
      _
    $region7: #{tpu_custom_call.1} parent=1 // pred_check_branch
      %24 = sbr.rel (0) target = $region9
    $region8: #{tpu_custom_call.1} parent=1 // pred_region
      _
    $region9: #{tpu_custom_call.1} parent=1 // pred_fallthru
      _
    // Predicated region
    $region10: #{tpu_custom_call.1} parent=1 // pred_check
      _
    $region11: #{tpu_custom_call.1} parent=1 // pred_check_branch
      %26 = sbr.rel (0) target = $region13
    $region12: #{tpu_custom_call.1} parent=1 // pred_region
      _
    $region13: #{tpu_custom_call.1} parent=1 // pred_fallthru
      _
    // Predicated region
    $region14: #{tpu_custom_call.1} parent=1 // pred_check
      _
    $region15: #{tpu_custom_call.1} parent=1 // pred_check_branch
      %28 = sbr.rel (0) target = $region17
    $region16: #{tpu_custom_call.1} parent=1 // pred_region
      _
    $region17: #{tpu_custom_call.1} parent=1 // pred_fallthru
      _
    // Predicated region
    $region18: #{tpu_custom_call.1} parent=1 // pred_check
      _
    $region19: #{tpu_custom_call.1} parent=1 // pred_check_branch
      %30 = sbr.rel (0) target = $region21
    $region20: #{tpu_custom_call.1} parent=1 // pred_region
      %31 = dma.done [#allocation3], 2048
    $region21: #{tpu_custom_call.1} parent=1 // pred_fallthru
      _
    %v32 = vld [vmem:[#allocation2] sm:$0xff]
    %v33 = vld [vmem:[#allocation2 + $0x8] sm:$0xff]
    %v34 = vld [vmem:[#allocation2 + $0x10] sm:$0xff]
    %v35 = vld [vmem:[#allocation2 + $0x18] sm:$0xff]
    %v36 = vld [vmem:[#allocation2 + $0x20] sm:$0xff]
    %v37 = vld [vmem:[#allocation2 + $0x28] sm:$0xff]
    %v38 = vld [vmem:[#allocation2 + $0x30] sm:$0xff]
    %v39 = vld [vmem:[#allocation2 + $0x38] sm:$0xff]
    %v40 = vld [vmem:[#allocation2 + $0x40] sm:$0xff]
    %v41 = vld [vmem:[#allocation2 + $0x48] sm:$0xff]
    %v42 = vld [vmem:[#allocation2 + $0x50] sm:$0xff]
    %v43 = vld [vmem:[#allocation2 + $0x58] sm:$0xff]
    %v44 = vld [vmem:[#allocation2 + $0x60] sm:$0xff]
    %v45 = vld [vmem:[#allocation2 + $0x68] sm:$0xff]
    %v46 = vld [vmem:[#allocation2 + $0x70] sm:$0xff]
    %v47 = vld [vmem:[#allocation2 + $0x78] sm:$0xff]
    %v48 = vadd.f32 %v32, %v33
    %49 = vadd.xlane.f32.xlu0 %v48
    %v50 = vpop.xlane.xlu0 %49
    %v51 = vadd.f32 %v34, %v35
    %52 = vadd.xlane.f32.xlu0 %v51
    %v53 = vpop.xlane.xlu0 %52
    %v54 = vadd.f32 %v36, %v37
    %55 = vadd.xlane.f32.xlu0 %v54
    %v56 = vpop.xlane.xlu0 %55
    %v57 = vadd.f32 %v38, %v39
    %58 = vadd.xlane.f32.xlu0 %v57
    %v59 = vpop.xlane.xlu0 %58
    %v60 = vadd.f32 %v40, %v41
    %61 = vadd.xlane.f32.xlu0 %v60
    %v62 = vpop.xlane.xlu0 %61
    %v63 = vadd.f32 %v42, %v43
    %64 = vadd.xlane.f32.xlu0 %v63
    %v65 = vpop.xlane.xlu0 %64
    %v66 = vadd.f32 %v44, %v45
    %67 = vadd.xlane.f32.xlu0 %v66
    %v68 = vpop.xlane.xlu0 %67
    %v69 = vadd.f32 %v46, %v47
    %70 = vadd.xlane.f32.xlu0 %v69
    %v71 = vpop.xlane.xlu0 %70
    %v72 = vrcp.pop 256.0
    %v73 = vmul.f32 %v50, %v72
    %v74 = vmul.f32 %v53, %v72
    %v75 = vmul.f32 %v56, %v72
    %v76 = vmul.f32 %v59, %v72
    %v77 = vmul.f32 %v62, %v72
    %v78 = vmul.f32 %v65, %v72
    %v79 = vmul.f32 %v68, %v72
    %v80 = vmul.f32 %v71, %v72
    %v81 = vld [vmem:[%s1] sm:$0xff]
    %v82 = vld [vmem:[%s1 + $0x8] sm:$0xff]
    %v83 = vld [vmem:[%s1 + $0x10] sm:$0xff]
    %v84 = vld [vmem:[%s1 + $0x18] sm:$0xff]
    %v93 = vlaneseq
    %v94 = vand.u32 %v93, 127
    %v95 = vlaneseq
    %v96 = vshrl.u32 %v95, 7
    %v97 = vsub.s32 %v94, %v96
    %v98 = vrot.slane %v73, %v97
    %v99 = vadd.s32 %v94, 4294967288
    %v100 = vlaneseq
    %v101 = vshrl.u32 %v100, 7
    %v102 = vsub.s32 %v99, %v101
    %v103 = vrot.slane %v74, %v102
    %vm104 = vcmask 130112
    %v105 = vsel %vm104, %v103, %v98
    %v106 = vadd.s32 %v94, 4294967280
    %v107 = vlaneseq
    %v108 = vshrl.u32 %v107, 7
    %v109 = vsub.s32 %v106, %v108
    %v110 = vrot.slane %v75, %v109
    %vm111 = vcmask 195712
    %v112 = vsel %vm111, %v110, %v105
    %v113 = vadd.s32 %v94, 4294967272
    %v114 = vlaneseq
    %v115 = vshrl.u32 %v114, 7
    %v116 = vsub.s32 %v113, %v115
    %v117 = vrot.slane %v76, %v116
    %vm118 = vcmask 261312
    %v119 = vsel %vm118, %v117, %v112
    %v120 = vlaneseq
    %v121 = vshrl.u32 %v120, 7
    %v122 = vsub.s32 %v94, %v121
    %v123 = vrot.slane %v77, %v122
    %v124 = vlaneseq
    %v125 = vshrl.u32 %v124, 7
    %v126 = vsub.s32 %v99, %v125
    %v127 = vrot.slane %v78, %v126
    %v128 = vsel %vm104, %v127, %v123
    %v129 = vlaneseq
    %v130 = vshrl.u32 %v129, 7
    %v131 = vsub.s32 %v106, %v130
    %v132 = vrot.slane %v79, %v131
    %v133 = vsel %vm111, %v132, %v128
    %v134 = vlaneseq
    %v135 = vshrl.u32 %v134, 7
    %v136 = vsub.s32 %v113, %v135
    %v137 = vrot.slane %v80, %v136
    %v138 = vsel %vm118, %v137, %v133
    %vm139 = vcmask 1041409
    %v140 = vsel %vm139, %v138, %v119
    %vm141 = vcmask 261120
    %v142 = vsel %vm141, %v140, 0
    %144 = vmatprep.subr.mxu0 0.0
    %145 = vmatpush1.msra.mxu0 %v81
    %146 = vmatprep.subr.mxu0 0.0
    %147 = vmatpush1.msra.mxu0 %v82
    %148 = vmatprep.subr.mxu0 0.0
    %149 = vmatpush1.msra.mxu0 %v83
    %150 = vmatprep.subr.mxu0 0.0
    %151 = vmatpush1.msra.mxu0 %v84
    %152 = vmatprep.subr.mxu0 0.0
    %153 = vmatpush1.msra.mxu0 0.0
    %154 = vmatprep.subr.mxu0 0.0
    %155 = vmatpush1.msra.mxu0 0.0
    %156 = vmatprep.subr.mxu0 0.0
    %157 = vmatpush1.msra.mxu0 0.0
    %158 = vmatprep.subr.mxu0 0.0
    %159 = vmatpush1.msra.mxu0 0.0
    %160 = vmatprep.subr.mxu0 0.0
    %161 = vmatpush1.msra.mxu0 0.0
    %162 = vmatprep.subr.mxu0 0.0
    %163 = vmatpush1.msra.mxu0 0.0
    %164 = vmatprep.subr.mxu0 0.0
    %165 = vmatpush1.msra.mxu0 0.0
    %166 = vmatprep.subr.mxu0 0.0
    %167 = vmatpush1.msra.mxu0 0.0
    %168 = vmatprep.subr.mxu0 0.0
    %169 = vmatpush1.msra.mxu0 0.0
    %170 = vmatprep.subr.mxu0 0.0
    %171 = vmatpush1.msra.mxu0 0.0
    %172 = vmatprep.subr.mxu0 0.0
    %173 = vmatpush1.msra.mxu0 0.0
    %174 = vmatprep.subr.mxu0 0.0
    %175 = vmatpush1.msra.mxu0 0.0
    %176 = vmatprep.subr.mxu0 0.0
    %177 = vmatpush1.msra.mxu0 0.0
    %178 = vmatprep.subr.mxu0 0.0
    %179 = vmatpush1.msra.mxu0 0.0
    %180 = vmatprep.subr.mxu0 0.0
    %181 = vmatpush1.msra.mxu0 0.0
    %182 = vmatprep.subr.mxu0 0.0
    %183 = vmatpush1.msra.mxu0 0.0
    %184 = vmatprep.subr.mxu0 0.0
    %185 = vmatpush1.msra.mxu0 0.0
    %186 = vmatprep.subr.mxu0 0.0
    %187 = vmatpush1.msra.mxu0 0.0
    %188 = vmatprep.subr.mxu0 0.0
    %189 = vmatpush1.msra.mxu0 0.0
    %190 = vmatprep.subr.mxu0 0.0
    %191 = vmatpush1.msra.mxu0 0.0
    %192 = vmatprep.subr.mxu0 0.0
    %193 = vmatpush1.msra.mxu0 0.0
    %194 = vmatprep.subr.mxu0 0.0
    %195 = vmatpush1.msra.mxu0 0.0
    %196 = vmatprep.subr.mxu0 0.0
    %197 = vmatpush1.msra.mxu0 0.0
    %198 = vmatprep.subr.mxu0 0.0
    %199 = vmatpush1.msra.mxu0 0.0
    %200 = vmatprep.subr.mxu0 0.0
    %201 = vmatpush1.msra.mxu0 0.0
    %202 = vmatprep.subr.mxu0 0.0
    %203 = vmatpush1.msra.mxu0 0.0
    %204 = vmatprep.subr.mxu0 0.0
    %205 = vmatpush1.msra.mxu0 0.0
    %206 = vmatprep.subr.mxu0 0.0
    %207 = vmatpush1.msra.mxu0 0.0
    %208 = vmatprep.mubr.f32.mxu0 0.0
    %209 = vmatmul.mubr.f32.gmra.mrb[0].mxu0 %v142
    %v210 = vpop.f32.mrb[0].mxu0
    %v211 = vadd.f32 0.0, %v210
    %v212 = vpop.f32.mrb[0].mxu0
    %213 = vdwg.mxu0
    %vm214 = vcmp.gt.f32.partialorder %v211, 0.0
    %v215 = vld [vmem:[%s2] sm:$0x1]
    %v217 = vlaneseq
    %v218 = vshrl.u32 %v217, 7
    %v219 = vsub.s32 0, %v218
    %v220 = vrot.slane %v215, %v219
    %v222 = vmul.f32 %v220, %v211
    %v223 = vsel %vm214, %v211, %v222
    %v224 = vld [vmem:[%s3] sm:$0x3]
    %vm225 = vcmask 15360
    %v227 = vsel %vm225, %v223, 0
    %vm229 = vcmask 1041408
    %v231 = vsel %vm229, %v224, 0
    %233 = vmatprep.subr.mxu0 0.0
    %234 = vmatpush1.msra.mxu0 %v231
    %235 = vmatprep.subr.mxu0 0.0
    %236 = vmatpush1.msra.mxu0 0.0
    %237 = vmatprep.subr.mxu0 0.0
    %238 = vmatpush1.msra.mxu0 0.0
    %239 = vmatprep.subr.mxu0 0.0
    %240 = vmatpush1.msra.mxu0 0.0
    %241 = vmatprep.subr.mxu0 0.0
    %242 = vmatpush1.msra.mxu0 0.0
    %243 = vmatprep.subr.mxu0 0.0
    %244 = vmatpush1.msra.mxu0 0.0
    %245 = vmatprep.subr.mxu0 0.0
    %246 = vmatpush1.msra.mxu0 0.0
    %247 = vmatprep.subr.mxu0 0.0
    %248 = vmatpush1.msra.mxu0 0.0
    %249 = vmatprep.subr.mxu0 0.0
    %250 = vmatpush1.msra.mxu0 0.0
    %251 = vmatprep.subr.mxu0 0.0
    %252 = vmatpush1.msra.mxu0 0.0
    %253 = vmatprep.subr.mxu0 0.0
    %254 = vmatpush1.msra.mxu0 0.0
    %255 = vmatprep.subr.mxu0 0.0
    %256 = vmatpush1.msra.mxu0 0.0
    %257 = vmatprep.subr.mxu0 0.0
    %258 = vmatpush1.msra.mxu0 0.0
    %259 = vmatprep.subr.mxu0 0.0
    %260 = vmatpush1.msra.mxu0 0.0
    %261 = vmatprep.subr.mxu0 0.0
    %262 = vmatpush1.msra.mxu0 0.0
    %263 = vmatprep.subr.mxu0 0.0
    %264 = vmatpush1.msra.mxu0 0.0
    %265 = vmatprep.subr.mxu0 0.0
    %266 = vmatpush1.msra.mxu0 0.0
    %267 = vmatprep.subr.mxu0 0.0
    %268 = vmatpush1.msra.mxu0 0.0
    %269 = vmatprep.subr.mxu0 0.0
    %270 = vmatpush1.msra.mxu0 0.0
    %271 = vmatprep.subr.mxu0 0.0
    %272 = vmatpush1.msra.mxu0 0.0
    %273 = vmatprep.subr.mxu0 0.0
    %274 = vmatpush1.msra.mxu0 0.0
    %275 = vmatprep.subr.mxu0 0.0
    %276 = vmatpush1.msra.mxu0 0.0
    %277 = vmatprep.subr.mxu0 0.0
    %278 = vmatpush1.msra.mxu0 0.0
    %279 = vmatprep.subr.mxu0 0.0
    %280 = vmatpush1.msra.mxu0 0.0
    %281 = vmatprep.subr.mxu0 0.0
    %282 = vmatpush1.msra.mxu0 0.0
    %283 = vmatprep.subr.mxu0 0.0
    %284 = vmatpush1.msra.mxu0 0.0
    %285 = vmatprep.subr.mxu0 0.0
    %286 = vmatpush1.msra.mxu0 0.0
    %287 = vmatprep.subr.mxu0 0.0
    %288 = vmatpush1.msra.mxu0 0.0
    %289 = vmatprep.subr.mxu0 0.0
    %290 = vmatpush1.msra.mxu0 0.0
    %291 = vmatprep.subr.mxu0 0.0
    %292 = vmatpush1.msra.mxu0 0.0
    %293 = vmatprep.subr.mxu0 0.0
    %294 = vmatpush1.msra.mxu0 0.0
    %295 = vmatprep.subr.mxu0 0.0
    %296 = vmatpush1.msra.mxu0 0.0
    %297 = vmatprep.mubr.f32.mxu0 0.0
    %298 = vmatmul.mubr.f32.gmra.mrb[0].mxu0 %v227
    %v299 = vpop.f32.mrb[0].mxu0
    %v300 = vadd.f32 0.0, %v299
    %v301 = vpop.f32.mrb[0].mxu0
    %302 = vdwg.mxu0
    %v303 = vxor.u32 %v300, 2147483648
    %v304 = vmul.f32 %v303, 1.442695
    %v305 = vpow.pop %v304
    %v306 = vadd.f32 %v305, 1.0
    %v307 = vrcp.pop %v306
    %v308 = vmul.f32 1.0, %v307
    %vm309 = vcmask 254976
    %310 = vst.msk [vmem:[#allocation5] sm:$0x3] %vm309, %v308
    // Predicated region
    $region22: #{tpu_custom_call.1} parent=1 // pred_check
      _
    $region23: #{tpu_custom_call.1} parent=1 // pred_check_branch
      %312 = sbr.rel (0) target = $region25
    $region24: #{tpu_custom_call.1} parent=1 // pred_region
      %s314 = ssub.s32 32, 32
      %315 = vsyncadd [#allocation4], %s314
      %s317 = sshll.u32 [#allocation5], 4
      %s318 = int_to_ptr.vmem [resolvable:$true] %s317
      %320 = dma.vmem_to_hbm [thread:$0]  %s318, 32, %s4, [#allocation4]
    $region25: #{tpu_custom_call.1} parent=1 // pred_fallthru
      _
    // Predicated region
    $region26: #{tpu_custom_call.1} parent=1 // pred_check
      _
    $region27: #{tpu_custom_call.1} parent=1 // pred_check_branch
      %322 = sbr.rel (0) target = $region29
    $region28: #{tpu_custom_call.1} parent=1 // pred_region
      %323 = dma.done [#allocation4], 32
    $region29: #{tpu_custom_call.1} parent=1 // pred_fallthru
      _
    %324 = vsyncpa [#allocation3], 1
    %325 = vsyncpa [#allocation4], 1

</llo_original>
